<compile_context>
chip_gen: v7x
topology: tpu7x:2x2x1
jax: 0.10.0
libtpu: 0.0.40
codegen_flags: <defaults>
</compile_context>

<pallas_src>
import functools

import jax
import jax.numpy as jnp
from jax.experimental import pallas as pl
from jax.experimental.pallas import tpu as pltpu


# ----------------------------------------------------------------------------
# Kernels
# ----------------------------------------------------------------------------
def _layernorm_kernel(x_ref, gamma_ref, beta_ref, o_ref, *, eps):
    # x_ref: (TS, D)   gamma_ref/beta_ref: (1, D)   o_ref: (TS, D)
    x = x_ref[...].astype(jnp.float32)
    mean = jnp.mean(x, axis=-1, keepdims=True)
    xc = x - mean
    var = jnp.mean(xc * xc, axis=-1, keepdims=True)
    inv = jax.lax.rsqrt(var + eps)
    y = xc * inv * gamma_ref[...].astype(jnp.float32) \
        + beta_ref[...].astype(jnp.float32)
    o_ref[...] = y.astype(o_ref.dtype)


def _residual_add_kernel(x_ref, y_ref, o_ref):
    # Dropout(p) in eval mode is identity: out = x + sublayer_out.
    o_ref[...] = x_ref[...] + y_ref[...]


# ----------------------------------------------------------------------------
# Tiling helper
# ----------------------------------------------------------------------------
def _row_tile(s: int, d: int, itemsize: int,
              target_bytes: int = 2 * 1024 * 1024) -> int:
    """Pick a sequence-row tile: ~2 MiB per block, sublane-aligned."""
    sub = 16 if itemsize == 2 else 8
    if s <= sub or s % sub != 0:
        return s
    max_rows = max(sub, target_bytes // max(d * itemsize, 1))
    ts = min(s, (max_rows // sub) * sub)
    return max(sub, ts)


_COMPILER_PARAMS = pltpu.CompilerParams(
    dimension_semantics=("parallel", "parallel"),
    vmem_limit_bytes=32 * 1024 * 1024,
)


# ----------------------------------------------------------------------------
# Pallas wrappers
# ----------------------------------------------------------------------------
def layernorm_pallas(x: jnp.ndarray, gamma: jnp.ndarray, beta: jnp.ndarray,
                     *, eps: float = 1e-5) -> jnp.ndarray:
    b, s, d = x.shape
    ts = _row_tile(s, d, jnp.dtype(x.dtype).itemsize)
    gamma2 = gamma.reshape(1, d)
    beta2 = beta.reshape(1, d)

    row_spec = pl.BlockSpec((pl.Squeezed(), ts, d), lambda i, j: (i, j, 0))
    vec_spec = pl.BlockSpec((1, d), lambda i, j: (0, 0))

    return pl.pallas_call(
        functools.partial(_layernorm_kernel, eps=eps),
        out_shape=jax.ShapeDtypeStruct((b, s, d), x.dtype),
        grid_spec=pl.GridSpec(
            grid=(b, pl.cdiv(s, ts)),
            in_specs=[row_spec, vec_spec, vec_spec],
            out_specs=row_spec,
        ),
        compiler_params=_COMPILER_PARAMS,
    )(x, gamma2, beta2)


def residual_add_pallas(x: jnp.ndarray, y: jnp.ndarray) -> jnp.ndarray:
    b, s, d = x.shape
    ts = _row_tile(s, d, jnp.dtype(x.dtype).itemsize)
    row_spec = pl.BlockSpec((pl.Squeezed(), ts, d), lambda i, j: (i, j, 0))

    return pl.pallas_call(
        _residual_add_kernel,
        out_shape=jax.ShapeDtypeStruct((b, s, d), x.dtype),
        grid_spec=pl.GridSpec(
            grid=(b, pl.cdiv(s, ts)),
            in_specs=[row_spec, row_spec],
            out_specs=row_spec,
        ),
        input_output_aliases={1: 0},   # reuse the sublayer-output buffer
        compiler_params=_COMPILER_PARAMS,
    )(x, y)


def sublayer_connection_forward(x, gamma, beta, sublayer, *, eps: float = 1e-5):
    """x + dropout(sublayer(LayerNorm(x))); dropout is identity (eval / p=0)."""
    ln = layernorm_pallas(x, gamma, beta, eps=eps)
    y = sublayer(ln).astype(x.dtype)
    return residual_add_pallas(x, y)


# ----------------------------------------------------------------------------
# Pure-JAX reference mirroring the PyTorch forward
# ----------------------------------------------------------------------------
def _reference_forward(x, gamma, beta, sublayer, eps: float = 1e-5):
    mean = jnp.mean(x, axis=-1, keepdims=True)
    var = jnp.mean((x - mean) ** 2, axis=-1, keepdims=True)
    ln = (x - mean) / jnp.sqrt(var + eps) * gamma + beta
    return x + sublayer(ln)   # Dropout is identity in eval mode


# ----------------------------------------------------------------------------
# Demo / self-check
# ----------------------------------------------------------------------------
if __name__ == "__main__":
    key = jax.random.PRNGKey(0)
    kx, kg, kb, kw = jax.random.split(key, 4)

    # Small but layout-friendly shapes: lane-dense D=128, sublane-aligned S=16.
    B, S, D = 2, 16, 128
    x = jax.random.normal(kx, (B, S, D), dtype=jnp.float32)
    gamma = 1.0 + 0.1 * jax.random.normal(kg, (D,), dtype=jnp.float32)
    beta = 0.1 * jax.random.normal(kb, (D,), dtype=jnp.float32)
    w = jax.random.normal(kw, (D, D), dtype=jnp.float32) / jnp.sqrt(D)

    def make_sublayer(weight):
        # Example sublayer (stand-in for the decoder's attention / FFN block).
        return lambda t: jnp.dot(t, weight, preferred_element_type=jnp.float32)

    fwd = jax.jit(lambda x_, g_, b_, w_: sublayer_connection_forward(
        x_, g_, b_, make_sublayer(w_)))

    out = jax.block_until_ready(fwd(x, gamma, beta, w))

    ref = _reference_forward(x, gamma, beta, make_sublayer(w))
    assert out.shape == (B, S, D), out.shape
    max_err = float(jnp.max(jnp.abs(out - ref)))
    assert jnp.allclose(out, ref, atol=1e-4, rtol=1e-4), f"mismatch: {max_err}"

    print("KERNEL_OK")
</pallas_src>

<mosaic_0001>
module attributes {stable_mosaic.version = 11 : i64} {
  func.func @_residual_add_kernel(%arg0: i32, %arg1: i32, %arg2: memref<1x16x128xf32, #tpu.memory_space<vmem>>, %arg3: memref<1x16x128xf32, #tpu.memory_space<vmem>>, %arg4: memref<1x16x128xf32, #tpu.memory_space<vmem>>) attributes {dimension_semantics = [#tpu.dimension_semantics<parallel>, #tpu.dimension_semantics<parallel>], iteration_bounds = array<i64: 2, 1>, scalar_prefetch = 0 : i64, scratch_operands = 0 : i64, tpu.core_type = #tpu.core_type<tc>, window_params = [{transform_indices = @transform_0, window_bounds = array<i64: 1, 16, 128>}, {transform_indices = @transform_1, window_bounds = array<i64: 1, 16, 128>}, {transform_indices = @transform_2, window_bounds = array<i64: 1, 16, 128>}]} {
    %c0 = arith.constant 0 : index
    %c0_0 = arith.constant 0 : index
    %c0_1 = arith.constant 0 : index
    %0 = vector.load %arg2[%c0, %c0_0, %c0_1] : memref<1x16x128xf32, #tpu.memory_space<vmem>>, vector<1x16x128xf32>
    %1 = vector.shape_cast %0 : vector<1x16x128xf32> to vector<16x128xf32>
    %c0_2 = arith.constant 0 : index
    %c0_3 = arith.constant 0 : index
    %c0_4 = arith.constant 0 : index
    %2 = vector.load %arg3[%c0_2, %c0_3, %c0_4] : memref<1x16x128xf32, #tpu.memory_space<vmem>>, vector<1x16x128xf32>
    %3 = vector.shape_cast %2 : vector<1x16x128xf32> to vector<16x128xf32>
    %4 = arith.addf %1, %3 : vector<16x128xf32>
    %c0_5 = arith.constant 0 : index
    %c0_6 = arith.constant 0 : index
    %c0_7 = arith.constant 0 : index
    %5 = vector.load %arg4[%c0_5, %c0_6, %c0_7] : memref<1x16x128xf32, #tpu.memory_space<vmem>>, vector<1x16x128xf32>
    %6 = vector.shape_cast %5 : vector<1x16x128xf32> to vector<16x128xf32>
    %7 = vector.shape_cast %4 : vector<16x128xf32> to vector<1x16x128xf32>
    tpu.vector_store %arg4[%c0_5, %c0_6, %c0_7], %7 {strides = array<i32>} : memref<1x16x128xf32, #tpu.memory_space<vmem>>, vector<1x16x128xf32>,
    return
  }
  func.func @transform_0(%arg0: i32, %arg1: i32) -> (i32, i32, i32) {
    %c0_i32 = arith.constant 0 : i32
    %c0_i32_0 = arith.constant 0 : i32
    return %arg0, %arg1, %c0_i32 : i32, i32, i32
  }
  func.func @transform_1(%arg0: i32, %arg1: i32) -> (i32, i32, i32) {
    %c0_i32 = arith.constant 0 : i32
    %c0_i32_0 = arith.constant 0 : i32
    return %arg0, %arg1, %c0_i32 : i32, i32, i32
  }
  func.func @transform_2(%arg0: i32, %arg1: i32) -> (i32, i32, i32) {
    %c0_i32 = arith.constant 0 : i32
    %c0_i32_0 = arith.constant 0 : i32
    return %arg0, %arg1, %c0_i32 : i32, i32, i32
  }
}

module attributes {stable_mosaic.version = 11 : i64} {
  func.func @_layernorm_kernel(%arg0: i32, %arg1: i32, %arg2: memref<1x16x128xf32, #tpu.memory_space<vmem>>, %arg3: memref<1x128xf32, #tpu.memory_space<vmem>>, %arg4: memref<1x128xf32, #tpu.memory_space<vmem>>, %arg5: memref<1x16x128xf32, #tpu.memory_space<vmem>>) attributes {dimension_semantics = [#tpu.dimension_semantics<parallel>, #tpu.dimension_semantics<parallel>], iteration_bounds = array<i64: 2, 1>, scalar_prefetch = 0 : i64, scratch_operands = 0 : i64, tpu.core_type = #tpu.core_type<tc>, window_params = [{transform_indices = @transform_0, window_bounds = array<i64: 1, 16, 128>}, {pipeline_mode = #tpu.pipeline_mode<synchronous>, transform_indices = @transform_1, window_bounds = array<i64: 1, 128>}, {pipeline_mode = #tpu.pipeline_mode<synchronous>, transform_indices = @transform_2, window_bounds = array<i64: 1, 128>}, {transform_indices = @transform_3, window_bounds = array<i64: 1, 16, 128>}]} {
    %c0 = arith.constant 0 : index
    %c0_0 = arith.constant 0 : index
    %c0_1 = arith.constant 0 : index
    %0 = vector.load %arg2[%c0, %c0_0, %c0_1] : memref<1x16x128xf32, #tpu.memory_space<vmem>>, vector<1x16x128xf32>
    %1 = vector.shape_cast %0 : vector<1x16x128xf32> to vector<16x128xf32>
    %cst = arith.constant dense<0.000000e+00> : vector<16xf32>
    %2 = vector.multi_reduction <add>, %1, %cst [1] : vector<16x128xf32> to vector<16xf32>
    %3 = vector.shape_cast %2 : vector<16xf32> to vector<16x1xf32>
    %cst_2 = arith.constant 1.280000e+02 : f32
    %4 = vector.broadcast %cst_2 : f32 to vector<16x1xf32>
    %5 = arith.divf %3, %4 : vector<16x1xf32>
    %6 = vector.broadcast %5 : vector<16x1xf32> to vector<16x128xf32>
    %7 = arith.subf %1, %6 : vector<16x128xf32>
    %8 = arith.mulf %7, %7 : vector<16x128xf32>
    %cst_3 = arith.constant dense<0.000000e+00> : vector<16xf32>
    %9 = vector.multi_reduction <add>, %8, %cst_3 [1] : vector<16x128xf32> to vector<16xf32>
    %10 = vector.shape_cast %9 : vector<16xf32> to vector<16x1xf32>
    %cst_4 = arith.constant 1.280000e+02 : f32
    %11 = vector.broadcast %cst_4 : f32 to vector<16x1xf32>
    %12 = arith.divf %10, %11 : vector<16x1xf32>
    %cst_5 = arith.constant 9.99999974E-6 : f32
    %13 = vector.broadcast %cst_5 : f32 to vector<16x1xf32>
    %14 = arith.addf %12, %13 : vector<16x1xf32>
    %15 = math.rsqrt %14 : vector<16x1xf32>
    %16 = vector.broadcast %15 : vector<16x1xf32> to vector<16x128xf32>
    %17 = arith.mulf %7, %16 : vector<16x128xf32>
    %c0_6 = arith.constant 0 : index
    %c0_7 = arith.constant 0 : index
    %18 = vector.load %arg3[%c0_6, %c0_7] : memref<1x128xf32, #tpu.memory_space<vmem>>, vector<1x128xf32>
    %19 = vector.broadcast %18 : vector<1x128xf32> to vector<16x128xf32>
    %20 = arith.mulf %17, %19 : vector<16x128xf32>
    %c0_8 = arith.constant 0 : index
    %c0_9 = arith.constant 0 : index
    %21 = vector.load %arg4[%c0_8, %c0_9] : memref<1x128xf32, #tpu.memory_space<vmem>>, vector<1x128xf32>
    %22 = vector.broadcast %21 : vector<1x128xf32> to vector<16x128xf32>
    %23 = arith.addf %20, %22 : vector<16x128xf32>
    %c0_10 = arith.constant 0 : index
    %c0_11 = arith.constant 0 : index
    %c0_12 = arith.constant 0 : index
    %24 = vector.load %arg5[%c0_10, %c0_11, %c0_12] : memref<1x16x128xf32, #tpu.memory_space<vmem>>, vector<1x16x128xf32>
    %25 = vector.shape_cast %24 : vector<1x16x128xf32> to vector<16x128xf32>
    %26 = vector.shape_cast %23 : vector<16x128xf32> to vector<1x16x128xf32>
    tpu.vector_store %arg5[%c0_10, %c0_11, %c0_12], %26 {strides = array<i32>} : memref<1x16x128xf32, #tpu.memory_space<vmem>>, vector<1x16x128xf32>,
    return
  }
  func.func @transform_0(%arg0: i32, %arg1: i32) -> (i32, i32, i32) {
    %c0_i32 = arith.constant 0 : i32
    %c0_i32_0 = arith.constant 0 : i32
    return %arg0, %arg1, %c0_i32 : i32, i32, i32
  }
  func.func @transform_1(%arg0: i32, %arg1: i32) -> (i32, i32) {
    %c0_i32 = arith.constant 0 : i32
    %c0_i32_0 = arith.constant 0 : i32
    %c0_i32_1 = arith.constant 0 : i32
    return %c0_i32, %c0_i32_0 : i32, i32
  }
  func.func @transform_2(%arg0: i32, %arg1: i32) -> (i32, i32) {
    %c0_i32 = arith.constant 0 : i32
    %c0_i32_0 = arith.constant 0 : i32
    %c0_i32_1 = arith.constant 0 : i32
    return %c0_i32, %c0_i32_0 : i32, i32
  }
  func.func @transform_3(%arg0: i32, %arg1: i32) -> (i32, i32, i32) {
    %c0_i32 = arith.constant 0 : i32
    %c0_i32_0 = arith.constant 0 : i32
    return %arg0, %arg1, %c0_i32 : i32, i32, i32
  }
}

</mosaic_0001>

<llo_original>
// kernel: _lambda_.2
$region0: #{_lambda_.2}
  #allocation0 [shape = 'u32[]', space=smem, size = 0x4, offset = 0x4, fixed_abs, tag = 'smem constant byte address 0x4 - core index']
  #allocation1 [shape = 'u32[144,128]{1,0:T(1,128)}', space=vmem, size = 0x12000, scoped, tag = 'internal scratch']
  %s0 = inlined_call_operand.hbm [shape: f32[2,16,128], index: 0, kind: input, shape index: {}]
  %s1 = inlined_call_operand.vmem [shape: f32[1,128], index: 1, kind: input, shape index: {}]
  %s2 = inlined_call_operand.vmem [shape: f32[1,128], index: 2, kind: input, shape index: {}]
  %s3 = inlined_call_operand.vmem [shape: f32[2,16,128], index: 3, kind: output, shape index: {}]
  %s4 = sld [smem:[#allocation0]]
  $region49: #{_lambda_.2} parent=0
    _
  %s6 = ssub.s32 1, %s4
  %s7 = scalar_select 0, %s6, %s4
  $region1: #{_lambda_.2} parent=0
    #allocation2 [shape = 'u8[16384]{0}', space=vmem, size = 0x4000, scoped, tag = 'input window, operand 0']
    #allocation3 [shape = 's32[2]{0}', space=sflag, size = 0x8, scoped, tag = 'scoped memory for _lambda_.2']
    %8 = vsyncpa [#allocation3], 0
    %s9 = scalar_lea.sflag [#allocation3], 1
    %10 = vsyncpa %s9, 0
    loop: start=0, step=1, limit=4
    $region2: #{_lambda_.2} parent=1 // loop_pre_header
      _
    $region3: #{_lambda_.2} parent=1 // loop_header
      %s12 = sphi 0, %s16
      %p13 = scmp.ge.s32.totalorder %s12, 4
      %s19 = sphi 0, %s31
      %s20 = sphi 0, %s27
      %s21 = sphi 0, %s19
      %s22 = sphi 0, %s20
      %s23 = sphi 0, %s21
      %s24 = sphi 0, %s22
      %s36 = sphi 0, %s38
      %s39 = sphi 0, %s36
      %s40 = sphi 0, %s39
      %s56 = sphi 0, %s40
      %s60 = sphi 0, %s60
      %s62 = sphi 0, %s60
      %s63 = sphi 0, %s62
      %s77 = sphi 0, %s63
      %s81 = sphi 0, %s81
      %s83 = sphi 0, %s81
      %s84 = sphi 0, %s83
      %s98 = sphi 0, %s84
      %s106 = sphi 0, %s108
      %s109 = sphi 0, %s106
      %s110 = sphi 0, %s109
      %s126 = sphi 0, %s110
    $region4: #{_lambda_.2} parent=1 // loop_header_branch
      %15 = sbr.rel (%p13) target = $region8
    $region5: #{_lambda_.2} parent=1 // loop_body
      %s17 = ssub.s32 %s12, 1
      %s18 = ssub.s32 %s12, 2
      %s25 = sadd.s32 1, %s20
      %p26 = scmp.ge.s32.totalorder %s25, 1
      %s27 = scalar_select %p26, 0, %s25
      %s28 = sadd.s32 1, %s19
      %s29 = scalar_select %p26, %s28, %s19
      %p30 = scmp.ge.s32.totalorder %s29, 2
      %s31 = scalar_select %p30, 0, %s29
      %s32 = ssub.s32 %s19, %s31
      %s33 = ssub.s32 %s20, %s27
      %s34 = sor.u32 %s32, %s33
      %p35 = scmp.eq.s32.totalorder %s34, 0
      %s37 = sadd.s32 %s36, 1
      %s38 = scalar_select %p35, %s36, %s37
      %p41 = pneg %p35
      %p42 = scmp.eq.s32.totalorder %s12, 1
      %p43 = por %p41, %p42
      %p44 = scmp.ne.s32.totalorder %s36, %s39
      %p45 = scmp.eq.s32.totalorder %s12, 0
      %p46 = por %p44, %p45
      %p47 = scmp.ne.s32.totalorder %s36, %s39
      %p48 = scmp.eq.s32.totalorder %s17, 1
      %p49 = por %p47, %p48
      %p50 = scmp.ne.s32.totalorder %s39, %s40
      %p51 = scmp.eq.s32.totalorder %s17, 0
      %p52 = por %p50, %p51
      %p53 = scmp.ne.s32.totalorder %s39, %s40
      %p54 = scmp.eq.s32.totalorder %s18, 1
      %p55 = por %p53, %p54
      %p57 = scmp.ne.s32.totalorder %s40, %s56
      %p58 = scmp.eq.s32.totalorder %s18, 0
      %p59 = por %p57, %p58
      %s61 = sadd.s32 %s60, 1
      %p64 = scmp.eq.s32.totalorder %s12, 1
      %p65 = scmp.ne.s32.totalorder %s60, %s62
      %p66 = scmp.eq.s32.totalorder %s12, 0
      %p67 = por %p65, %p66
      %p68 = scmp.ne.s32.totalorder %s60, %s62
      %p69 = scmp.eq.s32.totalorder %s17, 1
      %p70 = por %p68, %p69
      %p71 = scmp.ne.s32.totalorder %s62, %s63
      %p72 = scmp.eq.s32.totalorder %s17, 0
      %p73 = por %p71, %p72
      %p74 = scmp.ne.s32.totalorder %s62, %s63
      %p75 = scmp.eq.s32.totalorder %s18, 1
      %p76 = por %p74, %p75
      %p78 = scmp.ne.s32.totalorder %s63, %s77
      %p79 = scmp.eq.s32.totalorder %s18, 0
      %p80 = por %p78, %p79
      %s82 = sadd.s32 %s81, 1
      %p85 = scmp.eq.s32.totalorder %s12, 1
      %p86 = scmp.ne.s32.totalorder %s81, %s83
      %p87 = scmp.eq.s32.totalorder %s12, 0
      %p88 = por %p86, %p87
      %p89 = scmp.ne.s32.totalorder %s81, %s83
      %p90 = scmp.eq.s32.totalorder %s17, 1
      %p91 = por %p89, %p90
      %p92 = scmp.ne.s32.totalorder %s83, %s84
      %p93 = scmp.eq.s32.totalorder %s17, 0
      %p94 = por %p92, %p93
      %p95 = scmp.ne.s32.totalorder %s83, %s84
      %p96 = scmp.eq.s32.totalorder %s18, 1
      %p97 = por %p95, %p96
      %p99 = scmp.ne.s32.totalorder %s84, %s98
      %p100 = scmp.eq.s32.totalorder %s18, 0
      %p101 = por %p99, %p100
      %s102 = ssub.s32 %s19, %s31
      %s103 = ssub.s32 %s20, %s27
      %s104 = sor.u32 %s102, %s103
      %p105 = scmp.eq.s32.totalorder %s104, 0
      %s107 = sadd.s32 %s106, 1
      %s108 = scalar_select %p105, %s106, %s107
      %p111 = pneg %p105
      %p112 = scmp.eq.s32.totalorder %s12, 1
      %p113 = por %p111, %p112
      %p114 = scmp.ne.s32.totalorder %s106, %s109
      %p115 = scmp.eq.s32.totalorder %s12, 0
      %p116 = por %p114, %p115
      %p117 = scmp.ne.s32.totalorder %s106, %s109
      %p118 = scmp.eq.s32.totalorder %s17, 1
      %p119 = por %p117, %p118
      %p120 = scmp.ne.s32.totalorder %s109, %s110
      %p121 = scmp.eq.s32.totalorder %s17, 0
      %p122 = por %p120, %p121
      %p123 = scmp.ne.s32.totalorder %s109, %s110
      %p124 = scmp.eq.s32.totalorder %s18, 1
      %p125 = por %p123, %p124
      %p127 = scmp.ne.s32.totalorder %s110, %s126
      %p128 = scmp.eq.s32.totalorder %s18, 0
      %p129 = por %p127, %p128
      %p130 = scmp.le.s32.totalorder 1, %s12
      %p131 = scmp.lt.s32.totalorder %s12, 3
      %p132 = pnand %p130, %p131
      %p133 = pneg %p132
      // Predicated region
      $region9: #{_lambda_.2} parent=5 // pred_check
        _
      $region10: #{_lambda_.2} parent=5 // pred_check_branch
        %135 = sbr.rel (%p132) target = $region12
      $region11: #{_lambda_.2} parent=5 // pred_region
        %s136 = ssub.s32 %s12, 1
        // Predicated region
        $region13: #{_lambda_.2} parent=11 // pred_check
          %p137 = pneg %p73
        $region14: #{_lambda_.2} parent=11 // pred_check_branch
          %139 = sbr.rel (%p137) target = $region16
        $region15: #{_lambda_.2} parent=11 // pred_region
          _
        $region16: #{_lambda_.2} parent=11 // pred_fallthru
          _
        // Predicated region
        $region17: #{_lambda_.2} parent=11 // pred_check
          %p140 = pneg %p94
        $region18: #{_lambda_.2} parent=11 // pred_check_branch
          %142 = sbr.rel (%p140) target = $region20
        $region19: #{_lambda_.2} parent=11 // pred_region
          _
        $region20: #{_lambda_.2} parent=11 // pred_fallthru
          _
      $region12: #{_lambda_.2} parent=5 // pred_fallthru
        _
      %p143 = scmp.lt.s32.totalorder %s12, 2
      // Predicated region
      $region21: #{_lambda_.2} parent=5 // pred_check
        %p144 = pneg %p143
      $region22: #{_lambda_.2} parent=5 // pred_check_branch
        %146 = sbr.rel (%p144) target = $region24
      $region23: #{_lambda_.2} parent=5 // pred_region
        // Predicated region
        $region25: #{_lambda_.2} parent=23 // pred_check
          %p147 = pneg %p46
        $region26: #{_lambda_.2} parent=23 // pred_check_branch
          %149 = sbr.rel (%p147) target = $region28
        $region27: #{_lambda_.2} parent=23 // pred_region
          %s150 = sand.u32 %s36, 1
          %s151 = scalar_lea.sflag [#allocation3], %s150
          %s152 = sand.u32 %s36, 1
          %s153 = smul.addr %s152, 16
          %s154 = scalar_lea.vmem [#allocation2], %s153
          %s155 = smul.u32 2, %s20
          %s157 = ssub.s32 256, 256
          %158 = vsyncadd %s151, %s157
          %s159 = smul.addr %s19, 2
          %s160 = sadd.s32 %s155, %s159
          %s161 = smul.addr %s160, 128
          %s162 = scalar_lea.hbm %s0, %s161
          %s163 = sshll.u32 %s154, 4
          %s164 = int_to_ptr.vmem [resolvable:$true] %s163
          %169 = dma.hbm_to_vmem [thread:$0]  %s162, 256, %s164, %s151, 128, 128, 8
        $region28: #{_lambda_.2} parent=23 // pred_fallthru
          _
      $region24: #{_lambda_.2} parent=5 // pred_fallthru
        _
      %p170 = scmp.le.s32.totalorder 1, %s12
      %p171 = scmp.lt.s32.totalorder %s12, 3
      %p172 = pnand %p170, %p171
      %p173 = pneg %p172
      // Predicated region
      $region29: #{_lambda_.2} parent=5 // pred_check
        _
      $region30: #{_lambda_.2} parent=5 // pred_check_branch
        %175 = sbr.rel (%p172) target = $region32
      $region31: #{_lambda_.2} parent=5 // pred_region
        %s176 = ssub.s32 %s12, 1
        %s177 = sand.u32 %s39, 1
        %s178 = scalar_lea.sflag [#allocation3], %s177
        %s179 = sand.u32 %s39, 1
        %s180 = smul.addr %s179, 16
        %s181 = scalar_lea.vmem [#allocation2], %s180
        // Predicated region
        $region33: #{_lambda_.2} parent=31 // pred_check
          %p182 = pneg %p52
        $region34: #{_lambda_.2} parent=31 // pred_check_branch
          %184 = sbr.rel (%p182) target = $region36
        $region35: #{_lambda_.2} parent=31 // pred_region
          %185 = dma.done %s178, 256
        $region36: #{_lambda_.2} parent=31 // pred_fallthru
          _
        %s186 = sand.u32 %s39, 1
        %s187 = scalar_lea.sflag [#allocation3], %s186
        %s188 = sand.u32 %s39, 1
        %s189 = smul.addr %s188, 16
        %s190 = scalar_lea.vmem [#allocation2], %s189
        %p191 = pneg %p52
        %p192 = pneg %p49
        %p193 = pneg %p73
        %p194 = pneg %p70
        %p195 = pneg %p94
        %p196 = pneg %p91
        %p197 = pneg %p122
        %p198 = pneg %p119
        %s199 = smul.u32 2, %s22
        %p200 = scmp.lt.s32.totalorder %s21, 1
        %s201 = scalar_select %p200, %s21, 1
        %p202 = scmp.lt.s32.totalorder %s199, 1
        %s203 = scalar_select %p202, %s199, 1
        %s204 = smul.addr %s201, 2
        %s205 = sadd.s32 %s203, %s204
        %s206 = smul.addr %s205, 8
        %s207 = scalar_lea.vmem %s3, %s206
        %s208 = smul.u32 2, %s22
        %s209 = smul.u32 2, %s22
        %p210 = scmp.lt.s32.totalorder %s21, 1
        %s211 = scalar_select %p210, %s21, 1
        %p212 = scmp.lt.s32.totalorder %s209, 1
        %s213 = scalar_select %p212, %s209, 1
        %s214 = smul.addr %s211, 2
        %s215 = sadd.s32 %s213, %s214
        %s216 = smul.addr %s215, 8
        %s217 = scalar_lea.vmem %s3, %s216
        %s218 = smul.u32 2, %s22
        %v219 = vld [vmem:[%s181] sm:$0xff]
        %v220 = vld [vmem:[%s181 + $0x8] sm:$0xff]
        %221 = vadd.xlane.f32.xlu0 %v219
        %v222 = vpop.xlane.xlu0 %221
        %223 = vadd.xlane.f32.xlu0 %v220
        %v224 = vpop.xlane.xlu0 %223
        %v225 = vrcp.pop 128.0
        %v226 = vmul.f32 %v222, %v225
        %v227 = vmul.f32 %v224, %v225
        %v228 = vsub.f32 %v219, %v226
        %v229 = vsub.f32 %v220, %v227
        %v230 = vmul.f32 %v228, %v228
        %v231 = vmul.f32 %v229, %v229
        %232 = vadd.xlane.f32.xlu0 %v230
        %v233 = vpop.xlane.xlu0 %232
        %234 = vadd.xlane.f32.xlu0 %v231
        %v235 = vpop.xlane.xlu0 %234
        %v236 = vmul.f32 %v233, %v225
        %v237 = vmul.f32 %v235, %v225
        %v238 = vadd.f32 %v236, 1e-05
        %v239 = vadd.f32 %v237, 1e-05
        %v240 = vrsqrt.pop %v238
        %v241 = vrsqrt.pop %v239
        %v242 = vmul.f32 %v228, %v240
        %v243 = vmul.f32 %v229, %v241
        %v244 = vld [vmem:[%s1] sm:$0x1]
        %v246 = vlaneseq
        %v247 = vshrl.u32 %v246, 7
        %v248 = vsub.s32 0, %v247
        %v249 = vrot.slane %v244, %v248
        %v251 = vmul.f32 %v242, %v249
        %v252 = vmul.f32 %v243, %v249
        %v253 = vld [vmem:[%s2] sm:$0x1]
        %v255 = vlaneseq
        %v256 = vshrl.u32 %v255, 7
        %v257 = vsub.s32 0, %v256
        %v258 = vrot.slane %v253, %v257
        %v260 = vadd.f32 %v251, %v258
        %v261 = vadd.f32 %v252, %v258
        %262 = vst [vmem:[%s217] sm:$0xff] %v260
        %263 = vst [vmem:[%s217 + $0x8] sm:$0xff] %v261
        %s264 = smul.u32 2, %s22
        %p265 = scmp.lt.s32.totalorder %s21, 1
        %s266 = scalar_select %p265, %s21, 1
        %p267 = scmp.lt.s32.totalorder %s264, 1
        %s268 = scalar_select %p267, %s264, 1
        %s269 = smul.addr %s266, 2
        %s270 = sadd.s32 %s268, %s269
        %s271 = smul.addr %s270, 8
        %s272 = scalar_lea.vmem %s3, %s271
        // Predicated region
        $region37: #{_lambda_.2} parent=31 // pred_check
          %p273 = pneg %p119
        $region38: #{_lambda_.2} parent=31 // pred_check_branch
          %275 = sbr.rel (%p273) target = $region40
        $region39: #{_lambda_.2} parent=31 // pred_region
          %s276 = smul.u32 2, %s22
        $region40: #{_lambda_.2} parent=31 // pred_fallthru
          _
      $region32: #{_lambda_.2} parent=5 // pred_fallthru
        _
      %p277 = scmp.le.s32.totalorder 2, %s12
      // Predicated region
      $region41: #{_lambda_.2} parent=5 // pred_check
        %p278 = pneg %p277
      $region42: #{_lambda_.2} parent=5 // pred_check_branch
        %280 = sbr.rel (%p278) target = $region44
      $region43: #{_lambda_.2} parent=5 // pred_region
        %s281 = ssub.s32 %s12, 2
        // Predicated region
        $region45: #{_lambda_.2} parent=43 // pred_check
          %p282 = pneg %p125
        $region46: #{_lambda_.2} parent=43 // pred_check_branch
          %284 = sbr.rel (%p282) target = $region48
        $region47: #{_lambda_.2} parent=43 // pred_region
          %s285 = smul.u32 2, %s24
          %p286 = scmp.lt.s32.totalorder %s23, 1
          %s287 = scalar_select %p286, %s23, 1
          %p288 = scmp.lt.s32.totalorder %s285, 1
          %s289 = scalar_select %p288, %s285, 1
          %s290 = smul.addr %s287, 2
          %s291 = sadd.s32 %s289, %s290
          %s292 = smul.addr %s291, 8
          %s293 = scalar_lea.vmem %s3, %s292
        $region48: #{_lambda_.2} parent=43 // pred_fallthru
          _
      $region44: #{_lambda_.2} parent=5 // pred_fallthru
        _
    $region6: #{_lambda_.2} parent=1 // loop_footer
      %s16 = sadd.s32 1, %s12
    $region7: #{_lambda_.2} parent=1 // loop_footer_branch
      %11 = sbr.rel target = $region3
    $region8: #{_lambda_.2} parent=1 // loop_exit
      _
    %294 = vsyncpa [#allocation3], 1
    %s295 = scalar_lea.sflag [#allocation3], 1
    %296 = vsyncpa %s295, 1

// kernel: _lambda_.3
$region0: #{_lambda_.3}
  #allocation0 [shape = 'u32[]', space=smem, size = 0x4, offset = 0x4, fixed_abs, tag = 'smem constant byte address 0x4 - core index']
  #allocation1 [shape = 'u32[144,128]{1,0:T(1,128)}', space=vmem, size = 0x12000, scoped, tag = 'internal scratch']
  %s0 = inlined_call_operand.vmem [shape: f32[2,16,128], index: 0, kind: input, shape index: {}]
  %s1 = inlined_call_operand.hbm [shape: f32[2,16,128], index: 1, kind: input, shape index: {}, may-alias: {1,2}]
  %s2 = inlined_call_operand.hbm [shape: f32[2,16,128], index: 2, kind: output, shape index: {}, may-alias: {1,2}]
  %s3 = sld [smem:[#allocation0]]
  $region45: #{_lambda_.3} parent=0
    _
  %s5 = ssub.s32 1, %s3
  %s6 = scalar_select 0, %s5, %s3
  $region1: #{_lambda_.3} parent=0
    #allocation2 [shape = 'u8[16384]{0}', space=vmem, size = 0x4000, scoped, tag = 'input window, operand 1']
    #allocation3 [shape = 's32[2]{0}', space=sflag, size = 0x8, scoped, tag = 'scoped memory for _lambda_.3']
    #allocation4 [shape = 's32[2]{0}', space=sflag, size = 0x8, scoped, tag = 'scoped memory for _lambda_.3']
    #allocation5 [shape = 'u8[16384]{0}', space=vmem, size = 0x4000, scoped, tag = 'output window, operand 0']
    %7 = vsyncpa [#allocation3], 0
    %s8 = scalar_lea.sflag [#allocation3], 1
    %9 = vsyncpa %s8, 0
    %10 = vsyncpa [#allocation4], 0
    %s11 = scalar_lea.sflag [#allocation4], 1
    %12 = vsyncpa %s11, 0
    loop: start=0, step=1, limit=4
    $region2: #{_lambda_.3} parent=1 // loop_pre_header
      _
    $region3: #{_lambda_.3} parent=1 // loop_header
      %s14 = sphi 0, %s18
      %p15 = scmp.ge.s32.totalorder %s14, 4
      %s21 = sphi 0, %s33
      %s22 = sphi 0, %s29
      %s23 = sphi 0, %s21
      %s24 = sphi 0, %s22
      %s25 = sphi 0, %s23
      %s26 = sphi 0, %s24
      %s38 = sphi 0, %s40
      %s41 = sphi 0, %s38
      %s42 = sphi 0, %s41
      %s58 = sphi 0, %s42
      %s66 = sphi 0, %s68
      %s69 = sphi 0, %s66
      %s70 = sphi 0, %s69
      %s86 = sphi 0, %s70
      %s94 = sphi 0, %s96
      %s97 = sphi 0, %s94
      %s98 = sphi 0, %s97
      %s114 = sphi 0, %s98
    $region4: #{_lambda_.3} parent=1 // loop_header_branch
      %17 = sbr.rel (%p15) target = $region8
    $region5: #{_lambda_.3} parent=1 // loop_body
      %s19 = ssub.s32 %s14, 1
      %s20 = ssub.s32 %s14, 2
      %s27 = sadd.s32 1, %s22
      %p28 = scmp.ge.s32.totalorder %s27, 1
      %s29 = scalar_select %p28, 0, %s27
      %s30 = sadd.s32 1, %s21
      %s31 = scalar_select %p28, %s30, %s21
      %p32 = scmp.ge.s32.totalorder %s31, 2
      %s33 = scalar_select %p32, 0, %s31
      %s34 = ssub.s32 %s21, %s33
      %s35 = ssub.s32 %s22, %s29
      %s36 = sor.u32 %s34, %s35
      %p37 = scmp.eq.s32.totalorder %s36, 0
      %s39 = sadd.s32 %s38, 1
      %s40 = scalar_select %p37, %s38, %s39
      %p43 = pneg %p37
      %p44 = scmp.eq.s32.totalorder %s14, 1
      %p45 = por %p43, %p44
      %p46 = scmp.ne.s32.totalorder %s38, %s41
      %p47 = scmp.eq.s32.totalorder %s14, 0
      %p48 = por %p46, %p47
      %p49 = scmp.ne.s32.totalorder %s38, %s41
      %p50 = scmp.eq.s32.totalorder %s19, 1
      %p51 = por %p49, %p50
      %p52 = scmp.ne.s32.totalorder %s41, %s42
      %p53 = scmp.eq.s32.totalorder %s19, 0
      %p54 = por %p52, %p53
      %p55 = scmp.ne.s32.totalorder %s41, %s42
      %p56 = scmp.eq.s32.totalorder %s20, 1
      %p57 = por %p55, %p56
      %p59 = scmp.ne.s32.totalorder %s42, %s58
      %p60 = scmp.eq.s32.totalorder %s20, 0
      %p61 = por %p59, %p60
      %s62 = ssub.s32 %s21, %s33
      %s63 = ssub.s32 %s22, %s29
      %s64 = sor.u32 %s62, %s63
      %p65 = scmp.eq.s32.totalorder %s64, 0
      %s67 = sadd.s32 %s66, 1
      %s68 = scalar_select %p65, %s66, %s67
      %p71 = pneg %p65
      %p72 = scmp.eq.s32.totalorder %s14, 1
      %p73 = por %p71, %p72
      %p74 = scmp.ne.s32.totalorder %s66, %s69
      %p75 = scmp.eq.s32.totalorder %s14, 0
      %p76 = por %p74, %p75
      %p77 = scmp.ne.s32.totalorder %s66, %s69
      %p78 = scmp.eq.s32.totalorder %s19, 1
      %p79 = por %p77, %p78
      %p80 = scmp.ne.s32.totalorder %s69, %s70
      %p81 = scmp.eq.s32.totalorder %s19, 0
      %p82 = por %p80, %p81
      %p83 = scmp.ne.s32.totalorder %s69, %s70
      %p84 = scmp.eq.s32.totalorder %s20, 1
      %p85 = por %p83, %p84
      %p87 = scmp.ne.s32.totalorder %s70, %s86
      %p88 = scmp.eq.s32.totalorder %s20, 0
      %p89 = por %p87, %p88
      %s90 = ssub.s32 %s21, %s33
      %s91 = ssub.s32 %s22, %s29
      %s92 = sor.u32 %s90, %s91
      %p93 = scmp.eq.s32.totalorder %s92, 0
      %s95 = sadd.s32 %s94, 1
      %s96 = scalar_select %p93, %s94, %s95
      %p99 = pneg %p93
      %p100 = scmp.eq.s32.totalorder %s14, 1
      %p101 = por %p99, %p100
      %p102 = scmp.ne.s32.totalorder %s94, %s97
      %p103 = scmp.eq.s32.totalorder %s14, 0
      %p104 = por %p102, %p103
      %p105 = scmp.ne.s32.totalorder %s94, %s97
      %p106 = scmp.eq.s32.totalorder %s19, 1
      %p107 = por %p105, %p106
      %p108 = scmp.ne.s32.totalorder %s97, %s98
      %p109 = scmp.eq.s32.totalorder %s19, 0
      %p110 = por %p108, %p109
      %p111 = scmp.ne.s32.totalorder %s97, %s98
      %p112 = scmp.eq.s32.totalorder %s20, 1
      %p113 = por %p111, %p112
      %p115 = scmp.ne.s32.totalorder %s98, %s114
      %p116 = scmp.eq.s32.totalorder %s20, 0
      %p117 = por %p115, %p116
      %p118 = scmp.le.s32.totalorder 1, %s14
      %p119 = scmp.lt.s32.totalorder %s14, 3
      %p120 = pnand %p118, %p119
      %p121 = pneg %p120
      // Predicated region
      $region9: #{_lambda_.3} parent=5 // pred_check
        _
      $region10: #{_lambda_.3} parent=5 // pred_check_branch
        %123 = sbr.rel (%p120) target = $region12
      $region11: #{_lambda_.3} parent=5 // pred_region
        %s124 = ssub.s32 %s14, 1
      $region12: #{_lambda_.3} parent=5 // pred_fallthru
        _
      %p125 = scmp.lt.s32.totalorder %s14, 2
      // Predicated region
      $region13: #{_lambda_.3} parent=5 // pred_check
        %p126 = pneg %p125
      $region14: #{_lambda_.3} parent=5 // pred_check_branch
        %128 = sbr.rel (%p126) target = $region16
      $region15: #{_lambda_.3} parent=5 // pred_region
        // Predicated region
        $region17: #{_lambda_.3} parent=15 // pred_check
          %p129 = pneg %p48
        $region18: #{_lambda_.3} parent=15 // pred_check_branch
          %131 = sbr.rel (%p129) target = $region20
        $region19: #{_lambda_.3} parent=15 // pred_region
          %s132 = smul.u32 2, %s22
          %p133 = scmp.lt.s32.totalorder %s21, 1
          %s134 = scalar_select %p133, %s21, 1
          %p135 = scmp.lt.s32.totalorder %s132, 1
          %s136 = scalar_select %p135, %s132, 1
          %s137 = smul.addr %s134, 2
          %s138 = sadd.s32 %s136, %s137
          %s139 = smul.addr %s138, 8
          %s140 = scalar_lea.vmem %s0, %s139
          %s141 = smul.u32 2, %s22
        $region20: #{_lambda_.3} parent=15 // pred_fallthru
          _
        // Predicated region
        $region21: #{_lambda_.3} parent=15 // pred_check
          %p142 = pneg %p76
        $region22: #{_lambda_.3} parent=15 // pred_check_branch
          %144 = sbr.rel (%p142) target = $region24
        $region23: #{_lambda_.3} parent=15 // pred_region
          %s145 = sand.u32 %s66, 1
          %s146 = scalar_lea.sflag [#allocation3], %s145
          %s147 = sand.u32 %s66, 1
          %s148 = smul.addr %s147, 16
          %s149 = scalar_lea.vmem [#allocation2], %s148
          %s150 = smul.u32 2, %s22
          %s152 = ssub.s32 256, 256
          %153 = vsyncadd %s146, %s152
          %s154 = smul.addr %s21, 2
          %s155 = sadd.s32 %s150, %s154
          %s156 = smul.addr %s155, 128
          %s157 = scalar_lea.hbm %s1, %s156
          %s158 = sshll.u32 %s149, 4
          %s159 = int_to_ptr.vmem [resolvable:$true] %s158
          %164 = dma.hbm_to_vmem [thread:$0]  %s157, 256, %s159, %s146, 128, 128, 8
        $region24: #{_lambda_.3} parent=15 // pred_fallthru
          _
      $region16: #{_lambda_.3} parent=5 // pred_fallthru
        _
      %p165 = scmp.le.s32.totalorder 1, %s14
      %p166 = scmp.lt.s32.totalorder %s14, 3
      %p167 = pnand %p165, %p166
      %p168 = pneg %p167
      // Predicated region
      $region25: #{_lambda_.3} parent=5 // pred_check
        _
      $region26: #{_lambda_.3} parent=5 // pred_check_branch
        %170 = sbr.rel (%p167) target = $region28
      $region27: #{_lambda_.3} parent=5 // pred_region
        %s171 = ssub.s32 %s14, 1
        %s172 = sand.u32 %s69, 1
        %s173 = scalar_lea.sflag [#allocation3], %s172
        %s174 = sand.u32 %s69, 1
        %s175 = smul.addr %s174, 16
        %s176 = scalar_lea.vmem [#allocation2], %s175
        // Predicated region
        $region29: #{_lambda_.3} parent=27 // pred_check
          %p177 = pneg %p82
        $region30: #{_lambda_.3} parent=27 // pred_check_branch
          %179 = sbr.rel (%p177) target = $region32
        $region31: #{_lambda_.3} parent=27 // pred_region
          %180 = dma.done %s173, 256
        $region32: #{_lambda_.3} parent=27 // pred_fallthru
          _
        %s181 = smul.u32 2, %s24
        %p182 = scmp.lt.s32.totalorder %s23, 1
        %s183 = scalar_select %p182, %s23, 1
        %p184 = scmp.lt.s32.totalorder %s181, 1
        %s185 = scalar_select %p184, %s181, 1
        %s186 = smul.addr %s183, 2
        %s187 = sadd.s32 %s185, %s186
        %s188 = smul.addr %s187, 8
        %s189 = scalar_lea.vmem %s0, %s188
        %p190 = pneg %p54
        %p191 = pneg %p51
        %s192 = sand.u32 %s69, 1
        %s193 = scalar_lea.sflag [#allocation3], %s192
        %s194 = sand.u32 %s69, 1
        %s195 = smul.addr %s194, 16
        %s196 = scalar_lea.vmem [#allocation2], %s195
        %p197 = pneg %p82
        %p198 = pneg %p79
        %p199 = pneg %p110
        %p200 = pneg %p107
        %s201 = sand.u32 %s97, 1
        %s202 = scalar_lea.sflag [#allocation4], %s201
        %s203 = sand.u32 %s97, 1
        %s204 = smul.addr %s203, 16
        %s205 = scalar_lea.vmem [#allocation5], %s204
        %s206 = smul.u32 2, %s24
        %p207 = scmp.lt.s32.totalorder %s23, 1
        %s208 = scalar_select %p207, %s23, 1
        %p209 = scmp.lt.s32.totalorder %s206, 1
        %s210 = scalar_select %p209, %s206, 1
        %s211 = smul.addr %s208, 2
        %s212 = sadd.s32 %s210, %s211
        %s213 = smul.addr %s212, 8
        %s214 = scalar_lea.vmem %s0, %s213
        %s215 = smul.u32 2, %s24
        %s216 = smul.u32 2, %s24
        %s217 = smul.u32 2, %s24
        %v218 = vld [vmem:[%s214] sm:$0xff]
        %v219 = vld [vmem:[%s214 + $0x8] sm:$0xff]
        %v220 = vld [vmem:[%s176] sm:$0xff]
        %v221 = vld [vmem:[%s176 + $0x8] sm:$0xff]
        %v222 = vadd.f32 %v218, %v220
        %v223 = vadd.f32 %v219, %v221
        %224 = vst [vmem:[%s205] sm:$0xff] %v222
        %225 = vst [vmem:[%s205 + $0x8] sm:$0xff] %v223
        %s226 = sand.u32 %s97, 1
        %s227 = scalar_lea.sflag [#allocation4], %s226
        %s228 = sand.u32 %s97, 1
        %s229 = smul.addr %s228, 16
        %s230 = scalar_lea.vmem [#allocation5], %s229
        // Predicated region
        $region33: #{_lambda_.3} parent=27 // pred_check
          %p231 = pneg %p107
        $region34: #{_lambda_.3} parent=27 // pred_check_branch
          %233 = sbr.rel (%p231) target = $region36
        $region35: #{_lambda_.3} parent=27 // pred_region
          %s234 = smul.u32 2, %s24
          %s236 = ssub.s32 256, 256
          %237 = vsyncadd %s227, %s236
          %s238 = smul.addr %s23, 2
          %s239 = sadd.s32 %s234, %s238
          %s240 = smul.addr %s239, 128
          %s241 = scalar_lea.hbm %s2, %s240
          %s242 = sshll.u32 %s230, 4
          %s243 = int_to_ptr.vmem [resolvable:$true] %s242
          %248 = dma.vmem_to_hbm [thread:$0]  %s243, 256, %s241, %s227, 128, 128, 8
        $region36: #{_lambda_.3} parent=27 // pred_fallthru
          _
      $region28: #{_lambda_.3} parent=5 // pred_fallthru
        _
      %p249 = scmp.le.s32.totalorder 2, %s14
      // Predicated region
      $region37: #{_lambda_.3} parent=5 // pred_check
        %p250 = pneg %p249
      $region38: #{_lambda_.3} parent=5 // pred_check_branch
        %252 = sbr.rel (%p250) target = $region40
      $region39: #{_lambda_.3} parent=5 // pred_region
        %s253 = ssub.s32 %s14, 2
        // Predicated region
        $region41: #{_lambda_.3} parent=39 // pred_check
          %p254 = pneg %p113
        $region42: #{_lambda_.3} parent=39 // pred_check_branch
          %256 = sbr.rel (%p254) target = $region44
        $region43: #{_lambda_.3} parent=39 // pred_region
          %s257 = sand.u32 %s98, 1
          %s258 = scalar_lea.sflag [#allocation4], %s257
          %s259 = sand.u32 %s98, 1
          %s260 = smul.addr %s259, 16
          %s261 = scalar_lea.vmem [#allocation5], %s260
          %262 = dma.done %s258, 256
        $region44: #{_lambda_.3} parent=39 // pred_fallthru
          _
      $region40: #{_lambda_.3} parent=5 // pred_fallthru
        _
    $region6: #{_lambda_.3} parent=1 // loop_footer
      %s18 = sadd.s32 1, %s14
    $region7: #{_lambda_.3} parent=1 // loop_footer_branch
      %13 = sbr.rel target = $region3
    $region8: #{_lambda_.3} parent=1 // loop_exit
      _
    %263 = vsyncpa [#allocation3], 1
    %s264 = scalar_lea.sflag [#allocation3], 1
    %265 = vsyncpa %s264, 1
    %266 = vsyncpa [#allocation4], 1
    %s267 = scalar_lea.sflag [#allocation4], 1
    %268 = vsyncpa %s267, 1

</llo_original>
